<compile_context>
chip_gen: v7x
topology: tpu7x:2x2x1
jax: 0.10.0
libtpu: 0.0.40
codegen_flags: <defaults>
</compile_context>

<pallas_src>
import functools

import jax
import jax.numpy as jnp
import numpy as np
from jax.experimental import pallas as pl
from jax.experimental.pallas import tpu as pltpu


def _normal_w_kernel(w_ref, x_ref, o_ref, *, width):
    """w_ref: (nc, 3) per-(n,c) taps; x_ref/o_ref: (nc, H*W) flattened images."""
    x = x_ref[...]                                      # (nc, HW)
    hw = x.shape[-1]
    up_shift = width % hw                               # out[l] = x[l - W]  (row h-1)
    dn_shift = (hw - width) % hw                        # out[l] = x[l + W]  (row h+1)
    x_up = pltpu.roll(x, shift=up_shift, axis=1)        # XLU lane rotate
    x_dn = pltpu.roll(x, shift=dn_shift, axis=1)        # non-negative shift
    # Replicate padding: the wrapped lanes live only in image-row 0 / H-1;
    # overwrite them with x itself.
    lane = jax.lax.broadcasted_iota(jnp.int32, (1, hw), 1)
    x_up = jnp.where(lane < width, x, x_up)             # x[max(h-1, 0)]
    x_dn = jnp.where(lane >= hw - width, x, x_dn)       # x[min(h+1, H-1)]
    # Per-sublane taps broadcast along lanes; pure VPU multiply-add.
    o_ref[...] = (w_ref[:, 0:1] * x_up
                  + w_ref[:, 1:2] * x
                  + w_ref[:, 2:3] * x_dn)


def _pick_nc_tile(nc, hw, dtype_bytes, max_block_bytes=4 * 1024 * 1024):
    """Sublane (N*C) tile: the full extent if the (nc, H*W) block fits ~4 MiB,
    else the largest multiple of 8 that does (legal per the (8,128) rule; lane
    axis stays the full H*W so the in-image roll needs no halo)."""
    # TODO(synk): for very large H*W (a single slab row exceeding the VMEM
    # budget) this would need lane-axis tiling with a W-lane halo.
    rows = max_block_bytes // max(1, hw * dtype_bytes)
    rows = max(8, (rows // 8) * 8)
    return nc if nc <= rows else rows


def normal_w_forward(x, w):
    """x: (N, C, H, W); w: (C, 3) per-channel vertical taps."""
    N, C, H, W = x.shape
    NC, HW = N * C, H * W
    dtype_bytes = jnp.dtype(x.dtype).itemsize

    # Zero-copy layout: contiguous reshape, no transpose / extra HBM traffic.
    x2d = x.reshape(NC, HW)
    # Tiny per-sublane tap table (N*C, 3); replaces the old (3, N*C*W) array.
    w2d = jnp.tile(w.astype(x.dtype), (N, 1))

    nc_tile = _pick_nc_tile(NC, HW, dtype_bytes)
    grid = (pl.cdiv(NC, nc_tile),)

    out2d = pl.pallas_call(
        functools.partial(_normal_w_kernel, width=W),
        out_shape=jax.ShapeDtypeStruct((NC, HW), x.dtype),
        grid_spec=pltpu.PrefetchScalarGridSpec(
            num_scalar_prefetch=0,
            grid=grid,
            in_specs=[
                pl.BlockSpec((nc_tile, 3), lambda i: (i, 0)),    # taps (tiny)
                pl.BlockSpec((nc_tile, HW), lambda i: (i, 0)),   # input slab
            ],
            out_specs=pl.BlockSpec((nc_tile, HW), lambda i: (i, 0)),
        ),
        compiler_params=pltpu.CompilerParams(
            dimension_semantics=("parallel",),
            vmem_limit_bytes=48 * 1024 * 1024,   # safe on v7x (64 MiB physical)
        ),
    )(w2d, x2d)

    return out2d.reshape(N, C, H, W)


def normal_w_reference(x, w):
    """Pure-JAX reference: replicate pad H by 1, depthwise (3,1) conv."""
    H = x.shape[2]
    xp = jnp.pad(x, ((0, 0), (0, 0), (1, 1), (0, 0)), mode="edge")
    return (
        w[None, :, 0, None, None] * xp[:, :, 0:H, :]
        + w[None, :, 1, None, None] * xp[:, :, 1:H + 1, :]
        + w[None, :, 2, None, None] * xp[:, :, 2:H + 2, :]
    )


if __name__ == "__main__":
    channels = 4
    N, C, H, W = 2, channels, 16, 16
    key = jax.random.PRNGKey(0)
    kx, kw = jax.random.split(key)
    x = jax.random.normal(kx, (N, C, H, W), dtype=jnp.float32)

    # Module init weights: [0, -1, 1]^T repeated per channel.
    w_init = jnp.tile(jnp.array([0.0, -1.0, 1.0], dtype=jnp.float32), (channels, 1))
    out = jax.block_until_ready(normal_w_forward(x, w_init))
    np.testing.assert_allclose(
        np.asarray(out), np.asarray(normal_w_reference(x, w_init)),
        rtol=1e-5, atol=1e-5)

    # Random taps exercise all three stencil terms (the init's zero tap would
    # otherwise hide an error in the "up"-neighbour path).
    w_rand = jax.random.normal(kw, (channels, 3), dtype=jnp.float32)
    out_r = jax.block_until_ready(normal_w_forward(x, w_rand))
    np.testing.assert_allclose(
        np.asarray(out_r), np.asarray(normal_w_reference(x, w_rand)),
        rtol=1e-5, atol=1e-5)

    print("KERNEL_OK")
</pallas_src>

<mosaic_0001>
module attributes {stable_mosaic.version = 11 : i64} {
  func.func @_normal_w_kernel(%arg0: i32, %arg1: memref<8x3xf32, #tpu.memory_space<vmem>>, %arg2: memref<8x256xf32, #tpu.memory_space<vmem>>, %arg3: memref<8x256xf32, #tpu.memory_space<vmem>>) attributes {dimension_semantics = [#tpu.dimension_semantics<parallel>], iteration_bounds = array<i64: 1>, scalar_prefetch = 0 : i64, scratch_operands = 0 : i64, tpu.core_type = #tpu.core_type<tc>, window_params = [{transform_indices = @transform_0, window_bounds = array<i64: 8, 3>}, {transform_indices = @transform_1, window_bounds = array<i64: 8, 256>}, {transform_indices = @transform_2, window_bounds = array<i64: 8, 256>}]} {
    %c0 = arith.constant 0 : index
    %c0_0 = arith.constant 0 : index
    %0 = vector.load %arg2[%c0, %c0_0] : memref<8x256xf32, #tpu.memory_space<vmem>>, vector<8x256xf32>
    %c16_i32 = arith.constant 16 : i32
    %1 = tpu.dynamic_rotate %0 by %c16_i32 dim 1 : vector<8x256xf32>, i32 -> vector<8x256xf32>
    %c240_i32 = arith.constant 240 : i32
    %2 = tpu.dynamic_rotate %0 by %c240_i32 dim 1 : vector<8x256xf32>, i32 -> vector<8x256xf32>
    %3 = tpu.iota {dimensions = array<i32: 1>} : vector<1x256xi32>
    %c16_i32_1 = arith.constant 16 : i32
    %4 = vector.broadcast %c16_i32_1 : i32 to vector<1x256xi32>
    %5 = arith.cmpi slt, %3, %4 : vector<1x256xi32>
    %6 = vector.shape_cast %5 : vector<1x256xi1> to vector<1x256xi1>
    %7 = vector.broadcast %6 : vector<1x256xi1> to vector<8x256xi1>
    %8 = arith.select %7, %0, %1 : vector<8x256xi1>, vector<8x256xf32>
    %c240_i32_2 = arith.constant 240 : i32
    %9 = vector.broadcast %c240_i32_2 : i32 to vector<1x256xi32>
    %10 = arith.cmpi sge, %3, %9 : vector<1x256xi32>
    %11 = vector.shape_cast %10 : vector<1x256xi1> to vector<1x256xi1>
    %12 = vector.broadcast %11 : vector<1x256xi1> to vector<8x256xi1>
    %13 = arith.select %12, %0, %2 : vector<8x256xi1>, vector<8x256xf32>
    %c0_3 = arith.constant 0 : index
    %c0_4 = arith.constant 0 : index
    %14 = vector.load %arg1[%c0_3, %c0_4] : memref<8x3xf32, #tpu.memory_space<vmem>>, vector<8x1xf32>
    %15 = vector.broadcast %14 : vector<8x1xf32> to vector<8x256xf32>
    %16 = arith.mulf %15, %8 : vector<8x256xf32>
    %c0_5 = arith.constant 0 : index
    %c1 = arith.constant 1 : index
    %17 = vector.load %arg1[%c0_5, %c1] : memref<8x3xf32, #tpu.memory_space<vmem>>, vector<8x1xf32>
    %18 = vector.broadcast %17 : vector<8x1xf32> to vector<8x256xf32>
    %19 = arith.mulf %18, %0 : vector<8x256xf32>
    %20 = arith.addf %16, %19 : vector<8x256xf32>
    %c0_6 = arith.constant 0 : index
    %c2 = arith.constant 2 : index
    %21 = vector.load %arg1[%c0_6, %c2] : memref<8x3xf32, #tpu.memory_space<vmem>>, vector<8x1xf32>
    %22 = vector.broadcast %21 : vector<8x1xf32> to vector<8x256xf32>
    %23 = arith.mulf %22, %13 : vector<8x256xf32>
    %24 = arith.addf %20, %23 : vector<8x256xf32>
    %c0_7 = arith.constant 0 : index
    %c0_8 = arith.constant 0 : index
    %25 = vector.load %arg3[%c0_7, %c0_8] : memref<8x256xf32, #tpu.memory_space<vmem>>, vector<8x256xf32>
    tpu.vector_store %arg3[%c0_7, %c0_8], %24 {strides = array<i32>} : memref<8x256xf32, #tpu.memory_space<vmem>>, vector<8x256xf32>,
    return
  }
  func.func @transform_0(%arg0: i32) -> (i32, i32) {
    %c0_i32 = arith.constant 0 : i32
    %c0_i32_0 = arith.constant 0 : i32
    return %arg0, %c0_i32 : i32, i32
  }
  func.func @transform_1(%arg0: i32) -> (i32, i32) {
    %c0_i32 = arith.constant 0 : i32
    %c0_i32_0 = arith.constant 0 : i32
    return %arg0, %c0_i32 : i32, i32
  }
  func.func @transform_2(%arg0: i32) -> (i32, i32) {
    %c0_i32 = arith.constant 0 : i32
    %c0_i32_0 = arith.constant 0 : i32
    return %arg0, %c0_i32 : i32, i32
  }
}

</mosaic_0001>

<llo_original>
// kernel: tpu_custom_call.1
$region0: #{tpu_custom_call.1}
  #allocation0 [shape = 'u32[]', space=smem, size = 0x4, offset = 0x4, fixed_abs, tag = 'smem constant byte address 0x4 - core index']
  #allocation1 [shape = 'u32[144,128]{1,0:T(1,128)}', space=vmem, size = 0x12000, scoped, tag = 'internal scratch']
  %s0 = inlined_call_operand.vmem [shape: f32[8,3], index: 0, kind: input, shape index: {}]
  %s1 = inlined_call_operand.hbm [shape: f32[8,256], index: 1, kind: input, shape index: {}]
  %s2 = inlined_call_operand.hbm [shape: f32[8,256], index: 2, kind: output, shape index: {}]
  %s3 = sld [smem:[#allocation0]]
  $region22: #{tpu_custom_call.1} parent=0
    _
  %s5 = ssub.s32 1, %s3
  %s6 = scalar_select 0, %s5, %s3
  $region1: #{tpu_custom_call.1} parent=0
    #allocation2 [shape = 'u8[8192]{0}', space=vmem, size = 0x2000, scoped, tag = 'input window, operand 1, single buffered']
    #allocation3 [shape = 's32[1]{0}', space=sflag, size = 0x4, scoped, tag = 'scoped memory for tpu_custom_call.1']
    #allocation4 [shape = 's32[1]{0}', space=sflag, size = 0x4, scoped, tag = 'scoped memory for tpu_custom_call.1']
    #allocation5 [shape = 'u8[8192]{0}', space=vmem, size = 0x2000, scoped, tag = 'output window, operand 0, single buffered']
    %7 = vsyncpa [#allocation3], 0
    %8 = vsyncpa [#allocation4], 0
    // Predicated region
    $region2: #{tpu_custom_call.1} parent=1 // pred_check
      _
    $region3: #{tpu_custom_call.1} parent=1 // pred_check_branch
      %10 = sbr.rel (0) target = $region5
    $region4: #{tpu_custom_call.1} parent=1 // pred_region
      _
    $region5: #{tpu_custom_call.1} parent=1 // pred_fallthru
      _
    // Predicated region
    $region6: #{tpu_custom_call.1} parent=1 // pred_check
      _
    $region7: #{tpu_custom_call.1} parent=1 // pred_check_branch
      %12 = sbr.rel (0) target = $region9
    $region8: #{tpu_custom_call.1} parent=1 // pred_region
      %s14 = ssub.s32 256, 256
      %15 = vsyncadd [#allocation3], %s14
      %s17 = sshll.u32 [#allocation2], 4
      %s18 = int_to_ptr.vmem [resolvable:$true] %s17
      %20 = dma.hbm_to_vmem [thread:$0]  %s1, 256, %s18, [#allocation3]
    $region9: #{tpu_custom_call.1} parent=1 // pred_fallthru
      _
    // Predicated region
    $region10: #{tpu_custom_call.1} parent=1 // pred_check
      _
    $region11: #{tpu_custom_call.1} parent=1 // pred_check_branch
      %22 = sbr.rel (0) target = $region13
    $region12: #{tpu_custom_call.1} parent=1 // pred_region
      %23 = dma.done [#allocation3], 256
    $region13: #{tpu_custom_call.1} parent=1 // pred_fallthru
      _
    %v24 = vld [vmem:[#allocation2] sm:$0xff]
    %v25 = vld [vmem:[#allocation2 + $0x8] sm:$0xff]
    %26 = vrot.lane.b32.xlu0 %v24, 16
    %v27 = vpop.permute.xlu0 %26
    %28 = vrot.lane.b32.xlu0 %v25, 16
    %v29 = vpop.permute.xlu0 %28
    %v30 = vlaneseq
    %v31 = vand.u32 %v30, 127
    %vm32 = vcmp.lt.s32.totalorder %v31, 16
    %v33 = vsel %vm32, %v27, %v29
    %v34 = vsel %vm32, %v29, %v27
    %35 = vrot.lane.b32.xlu0 %v24, 112
    %v36 = vpop.permute.xlu0 %35
    %37 = vrot.lane.b32.xlu0 %v25, 112
    %v38 = vpop.permute.xlu0 %37
    %vm39 = vcmp.lt.s32.totalorder %v31, 112
    %v40 = vsel %vm39, %v36, %v38
    %v41 = vsel %vm39, %v38, %v36
    %v42 = vadd.s32 %v31, 128
    %vm43 = vcmp.lt.s32.totalorder %v42, 16
    %v44 = vsel %vm32, 1, 0
    %v45 = vsel %vm43, 1, 0
    %vm46 = vcmp.eq.s32.totalorder %v44, 1
    %vm47 = vcmp.eq.s32.totalorder %v45, 1
    %v48 = vsel %vm46, %v24, %v34
    %v49 = vsel %vm47, %v25, %v33
    %vm50 = vcmp.ge.s32.totalorder %v31, 240
    %vm51 = vcmp.ge.s32.totalorder %v42, 240
    %v52 = vsel %vm50, 1, 0
    %v53 = vsel %vm51, 1, 0
    %vm54 = vcmp.eq.s32.totalorder %v52, 1
    %vm55 = vcmp.eq.s32.totalorder %v53, 1
    %v56 = vsel %vm54, %v24, %v40
    %v57 = vsel %vm55, %v25, %v41
    %v58 = vld [vmem:[%s0] sm:$0xff]
    %60 = vset.pattern.permute.xlu0 0
    %61 = vperm.xlu0 %60, %v58
    %v62 = vpop.permute.xlu0 %61
    %v64 = vmul.f32 %v62, %v48
    %v65 = vmul.f32 %v62, %v49
    %66 = vset.pattern.permute.xlu0 1
    %67 = vperm.xlu0 %66, %v58
    %v68 = vpop.permute.xlu0 %67
    %v70 = vmul.f32 %v68, %v24
    %v71 = vmul.f32 %v68, %v25
    %v72 = vadd.f32 %v64, %v70
    %v73 = vadd.f32 %v65, %v71
    %74 = vset.pattern.permute.xlu0 2
    %75 = vperm.xlu0 %74, %v58
    %v76 = vpop.permute.xlu0 %75
    %v78 = vmul.f32 %v76, %v56
    %v79 = vmul.f32 %v76, %v57
    %v80 = vadd.f32 %v72, %v78
    %v81 = vadd.f32 %v73, %v79
    %82 = vst [vmem:[#allocation5] sm:$0xff] %v80
    %83 = vst [vmem:[#allocation5 + $0x8] sm:$0xff] %v81
    // Predicated region
    $region14: #{tpu_custom_call.1} parent=1 // pred_check
      _
    $region15: #{tpu_custom_call.1} parent=1 // pred_check_branch
      %85 = sbr.rel (0) target = $region17
    $region16: #{tpu_custom_call.1} parent=1 // pred_region
      %s87 = ssub.s32 256, 256
      %88 = vsyncadd [#allocation4], %s87
      %s90 = sshll.u32 [#allocation5], 4
      %s91 = int_to_ptr.vmem [resolvable:$true] %s90
      %93 = dma.vmem_to_hbm [thread:$0]  %s91, 256, %s2, [#allocation4]
    $region17: #{tpu_custom_call.1} parent=1 // pred_fallthru
      _
    // Predicated region
    $region18: #{tpu_custom_call.1} parent=1 // pred_check
      _
    $region19: #{tpu_custom_call.1} parent=1 // pred_check_branch
      %95 = sbr.rel (0) target = $region21
    $region20: #{tpu_custom_call.1} parent=1 // pred_region
      %96 = dma.done [#allocation4], 256
    $region21: #{tpu_custom_call.1} parent=1 // pred_fallthru
      _
    %97 = vsyncpa [#allocation3], 1
    %98 = vsyncpa [#allocation4], 1

</llo_original>
